<compile_context>
chip_gen: v6e
topology: v6e:2x2x1
jax: 0.10.0
libtpu: 0.0.40
codegen_flags: <defaults>
</compile_context>

<pallas_src>
import jax
import jax.numpy as jnp
from jax.experimental import pallas as pl
from jax.experimental.pallas import tpu as pltpu

LN_EPS = 1e-12  # BERT-style LayerNorm epsilon


def _self_output_kernel(x_ref, res_ref, w_ref, b_ref, gamma_ref, beta_ref, o_ref):
    # x_ref:     (TM, H)  tile of hidden_states (attention output), matmul dtype (bf16)
    # res_ref:   (TM, H)  tile of input_tensor (residual), native dtype
    # w_ref:     (H, H)   dense weight, pre-transposed so y = x @ w, matmul dtype (bf16)
    # b_ref:     (1, H)   dense bias (f32)
    # gamma_ref: (1, H)   LayerNorm scale (f32)
    # beta_ref:  (1, H)   LayerNorm shift (f32)
    x = x_ref[...]
    # dense: y = x @ W^T + b  (w_ref holds W^T); MXU with f32 accumulation
    y = jnp.dot(x, w_ref[...], preferred_element_type=jnp.float32) + b_ref[...]
    # dropout: identity in eval mode
    # TODO(synk): training-mode dropout (pltpu.prng_seed + prng_random_bits mask) not wired in.
    z = y + res_ref[...].astype(jnp.float32)

    # LayerNorm over the hidden dim, all in f32.
    inv_h = 1.0 / z.shape[-1]                      # compile-time constant, no divide in hot path
    mean = jnp.sum(z, axis=-1, keepdims=True) * inv_h
    centered = z - mean
    var = jnp.sum(centered * centered, axis=-1, keepdims=True) * inv_h
    inv = jax.lax.rsqrt(var + LN_EPS)              # EUP slot
    out = centered * inv * gamma_ref[...] + beta_ref[...]
    o_ref[...] = out.astype(o_ref.dtype)


def _round_up(x, m):
    return (x + m - 1) // m * m


def transformer_self_output(hidden_states, input_tensor, w, b, gamma, beta,
                            *, tm=256, matmul_dtype=jnp.bfloat16):
    """hidden_states, input_tensor: [B, S, H]; w: [H, H] (already W^T); b/gamma/beta: [H]."""
    B, S, H = hidden_states.shape
    rows = B * S
    out_dtype = hidden_states.dtype

    # Clamp the row tile to the (8-aligned) problem size, then to the VMEM budget.
    tm = max(8, min(tm, _round_up(rows, 8)))
    tm = _round_up(tm, 8)

    x_item = jnp.dtype(matmul_dtype).itemsize
    r_item = jnp.dtype(input_tensor.dtype).itemsize
    o_item = jnp.dtype(out_dtype).itemsize

    def _footprint(t):
        # double-buffered x / residual / output tiles + (conservatively 2x) resident W^T + params
        return (2 * t * H * (x_item + r_item + o_item)
                + 2 * H * H * x_item
                + 6 * H * 4)

    # Keep under ~24 MiB (headroom below the 32 MiB default scoped VMEM limit on v6e/v7x).
    while tm > 8 and _footprint(tm) > 24 * 1024 * 1024:
        tm //= 2
        tm = _round_up(tm, 8)
    # TODO(synk): for very large H (>=2048 on v7x) add a K grid axis with an f32 VMEM
    # accumulator (P3 init/finalize via pl.when) so W^T streams in (tk, H) slabs.

    rows_p = _round_up(rows, tm)

    # Flatten + cast matmul operands to bf16 (f32 accumulation inside the kernel).
    x2 = hidden_states.reshape(rows, H).astype(matmul_dtype)
    r2 = input_tensor.reshape(rows, H)
    if rows_p != rows:
        pad = rows_p - rows
        x2 = jnp.pad(x2, ((0, pad), (0, 0)))
        r2 = jnp.pad(r2, ((0, pad), (0, 0)))

    w_mm = w.astype(matmul_dtype)
    b2 = b.reshape(1, H).astype(jnp.float32)
    g2 = gamma.reshape(1, H).astype(jnp.float32)
    be2 = beta.reshape(1, H).astype(jnp.float32)

    cost = pl.CostEstimate(
        flops=2 * rows_p * H * H,
        transcendentals=rows_p,  # one rsqrt per row
        bytes_accessed=(rows_p * H * (x_item + r_item + o_item)
                        + H * H * x_item + 3 * H * 4),
    )

    out = pl.pallas_call(
        _self_output_kernel,
        out_shape=jax.ShapeDtypeStruct((rows_p, H), out_dtype),
        grid_spec=pltpu.PrefetchScalarGridSpec(
            num_scalar_prefetch=0,
            grid=(rows_p // tm,),
            in_specs=[
                pl.BlockSpec((tm, H), lambda i: (i, 0)),   # hidden_states tile (bf16)
                pl.BlockSpec((tm, H), lambda i: (i, 0)),   # residual tile
                pl.BlockSpec((H, H), lambda i: (0, 0)),    # dense weight W^T (bf16, resident)
                pl.BlockSpec((1, H), lambda i: (0, 0)),    # dense bias
                pl.BlockSpec((1, H), lambda i: (0, 0)),    # LN gamma
                pl.BlockSpec((1, H), lambda i: (0, 0)),    # LN beta
            ],
            out_specs=pl.BlockSpec((tm, H), lambda i: (i, 0)),
        ),
        compiler_params=pltpu.CompilerParams(
            dimension_semantics=("parallel",)),
        cost_estimate=cost,
    )(x2, r2, w_mm, b2, g2, be2)

    if rows_p != rows:
        out = out[:rows]
    return out.reshape(B, S, H)


def reference(hidden_states, input_tensor, w, b, gamma, beta):
    y = jnp.einsum("bsh,hk->bsk", hidden_states, w) + b
    z = y + input_tensor
    mean = jnp.mean(z, axis=-1, keepdims=True)
    var = jnp.mean((z - mean) ** 2, axis=-1, keepdims=True)
    return (z - mean) / jnp.sqrt(var + LN_EPS) * gamma + beta


if __name__ == "__main__":
    B, S, H = 2, 8, 128  # small shapes; H kept lane-dense (128)
    key = jax.random.PRNGKey(0)
    k1, k2, k3, k4 = jax.random.split(key, 4)

    hidden_states = jax.random.normal(k1, (B, S, H), dtype=jnp.float32)
    input_tensor = jax.random.normal(k2, (B, S, H), dtype=jnp.float32)

    # Deterministic parameter init (Linear weight stored pre-transposed: y = x @ w + b)
    w = jax.random.normal(k3, (H, H), dtype=jnp.float32) * 0.02
    b = jax.random.normal(k4, (H,), dtype=jnp.float32) * 0.02
    gamma = jnp.ones((H,), dtype=jnp.float32)
    beta = jnp.zeros((H,), dtype=jnp.float32)

    out = transformer_self_output(hidden_states, input_tensor, w, b, gamma, beta)
    out = jax.block_until_ready(out)

    ref = reference(hidden_states, input_tensor, w, b, gamma, beta)
    # bf16 matmul operands with f32 accumulation: tolerance set for bf16 operand rounding.
    assert jnp.allclose(out, ref, atol=2e-2, rtol=2e-2), "mismatch vs reference"
    print("KERNEL_OK")
</pallas_src>

<mosaic_0001>
module attributes {stable_mosaic.version = 11 : i64} {
  func.func @_self_output_kernel(%arg0: i32, %arg1: memref<16x128xbf16, #tpu.memory_space<vmem>>, %arg2: memref<16x128xf32, #tpu.memory_space<vmem>>, %arg3: memref<128x128xbf16, #tpu.memory_space<vmem>>, %arg4: memref<1x128xf32, #tpu.memory_space<vmem>>, %arg5: memref<1x128xf32, #tpu.memory_space<vmem>>, %arg6: memref<1x128xf32, #tpu.memory_space<vmem>>, %arg7: memref<16x128xf32, #tpu.memory_space<vmem>>) attributes {dimension_semantics = [#tpu.dimension_semantics<parallel>], iteration_bounds = array<i64: 1>, scalar_prefetch = 0 : i64, scratch_operands = 0 : i64, tpu.core_type = #tpu.core_type<tc>, window_params = [{transform_indices = @transform_0, window_bounds = array<i64: 16, 128>}, {transform_indices = @transform_1, window_bounds = array<i64: 16, 128>}, {pipeline_mode = #tpu.pipeline_mode<synchronous>, transform_indices = @transform_2, window_bounds = array<i64: 128, 128>}, {pipeline_mode = #tpu.pipeline_mode<synchronous>, transform_indices = @transform_3, window_bounds = array<i64: 1, 128>}, {pipeline_mode = #tpu.pipeline_mode<synchronous>, transform_indices = @transform_4, window_bounds = array<i64: 1, 128>}, {pipeline_mode = #tpu.pipeline_mode<synchronous>, transform_indices = @transform_5, window_bounds = array<i64: 1, 128>}, {transform_indices = @transform_6, window_bounds = array<i64: 16, 128>}]} {
    %c0 = arith.constant 0 : index
    %c0_0 = arith.constant 0 : index
    %0 = vector.load %arg1[%c0, %c0_0] : memref<16x128xbf16, #tpu.memory_space<vmem>>, vector<16x128xbf16>
    %c0_1 = arith.constant 0 : index
    %c0_2 = arith.constant 0 : index
    %1 = vector.load %arg3[%c0_1, %c0_2] : memref<128x128xbf16, #tpu.memory_space<vmem>>, vector<128x128xbf16>
    %cst = arith.constant dense<0.000000e+00> : vector<16x128xf32>
    %2 = tpu.matmul %0, %1, %cst {dimension_numbers = #tpu.dot_dimension_numbers<[1], [0], [0], [1], [0, 0, 1, 1], [], []>} : vector<16x128xbf16>, vector<128x128xbf16>, vector<16x128xf32> -> vector<16x128xf32>
    %c0_3 = arith.constant 0 : index
    %c0_4 = arith.constant 0 : index
    %3 = vector.load %arg4[%c0_3, %c0_4] : memref<1x128xf32, #tpu.memory_space<vmem>>, vector<1x128xf32>
    %4 = vector.broadcast %3 : vector<1x128xf32> to vector<16x128xf32>
    %5 = arith.addf %2, %4 : vector<16x128xf32>
    %c0_5 = arith.constant 0 : index
    %c0_6 = arith.constant 0 : index
    %6 = vector.load %arg2[%c0_5, %c0_6] : memref<16x128xf32, #tpu.memory_space<vmem>>, vector<16x128xf32>
    %7 = arith.addf %5, %6 : vector<16x128xf32>
    %cst_7 = arith.constant dense<0.000000e+00> : vector<16xf32>
    %8 = vector.multi_reduction <add>, %7, %cst_7 [1] : vector<16x128xf32> to vector<16xf32>
    %9 = vector.shape_cast %8 : vector<16xf32> to vector<16x1xf32>
    %cst_8 = arith.constant 7.812500e-03 : f32
    %10 = vector.broadcast %cst_8 : f32 to vector<16x1xf32>
    %11 = arith.mulf %9, %10 : vector<16x1xf32>
    %12 = vector.broadcast %11 : vector<16x1xf32> to vector<16x128xf32>
    %13 = arith.subf %7, %12 : vector<16x128xf32>
    %14 = arith.mulf %13, %13 : vector<16x128xf32>
    %cst_9 = arith.constant dense<0.000000e+00> : vector<16xf32>
    %15 = vector.multi_reduction <add>, %14, %cst_9 [1] : vector<16x128xf32> to vector<16xf32>
    %16 = vector.shape_cast %15 : vector<16xf32> to vector<16x1xf32>
    %cst_10 = arith.constant 7.812500e-03 : f32
    %17 = vector.broadcast %cst_10 : f32 to vector<16x1xf32>
    %18 = arith.mulf %16, %17 : vector<16x1xf32>
    %cst_11 = arith.constant 9.99999996E-13 : f32
    %19 = vector.broadcast %cst_11 : f32 to vector<16x1xf32>
    %20 = arith.addf %18, %19 : vector<16x1xf32>
    %21 = math.rsqrt %20 : vector<16x1xf32>
    %22 = vector.broadcast %21 : vector<16x1xf32> to vector<16x128xf32>
    %23 = arith.mulf %13, %22 : vector<16x128xf32>
    %c0_12 = arith.constant 0 : index
    %c0_13 = arith.constant 0 : index
    %24 = vector.load %arg5[%c0_12, %c0_13] : memref<1x128xf32, #tpu.memory_space<vmem>>, vector<1x128xf32>
    %25 = vector.broadcast %24 : vector<1x128xf32> to vector<16x128xf32>
    %26 = arith.mulf %23, %25 : vector<16x128xf32>
    %c0_14 = arith.constant 0 : index
    %c0_15 = arith.constant 0 : index
    %27 = vector.load %arg6[%c0_14, %c0_15] : memref<1x128xf32, #tpu.memory_space<vmem>>, vector<1x128xf32>
    %28 = vector.broadcast %27 : vector<1x128xf32> to vector<16x128xf32>
    %29 = arith.addf %26, %28 : vector<16x128xf32>
    %c0_16 = arith.constant 0 : index
    %c0_17 = arith.constant 0 : index
    %30 = vector.load %arg7[%c0_16, %c0_17] : memref<16x128xf32, #tpu.memory_space<vmem>>, vector<16x128xf32>
    tpu.vector_store %arg7[%c0_16, %c0_17], %29 {strides = array<i32>} : memref<16x128xf32, #tpu.memory_space<vmem>>, vector<16x128xf32>,
    return
  }
  func.func @transform_0(%arg0: i32) -> (i32, i32) {
    %c0_i32 = arith.constant 0 : i32
    %c0_i32_0 = arith.constant 0 : i32
    return %arg0, %c0_i32 : i32, i32
  }
  func.func @transform_1(%arg0: i32) -> (i32, i32) {
    %c0_i32 = arith.constant 0 : i32
    %c0_i32_0 = arith.constant 0 : i32
    return %arg0, %c0_i32 : i32, i32
  }
  func.func @transform_2(%arg0: i32) -> (i32, i32) {
    %c0_i32 = arith.constant 0 : i32
    %c0_i32_0 = arith.constant 0 : i32
    %c0_i32_1 = arith.constant 0 : i32
    return %c0_i32, %c0_i32_0 : i32, i32
  }
  func.func @transform_3(%arg0: i32) -> (i32, i32) {
    %c0_i32 = arith.constant 0 : i32
    %c0_i32_0 = arith.constant 0 : i32
    %c0_i32_1 = arith.constant 0 : i32
    return %c0_i32, %c0_i32_0 : i32, i32
  }
  func.func @transform_4(%arg0: i32) -> (i32, i32) {
    %c0_i32 = arith.constant 0 : i32
    %c0_i32_0 = arith.constant 0 : i32
    %c0_i32_1 = arith.constant 0 : i32
    return %c0_i32, %c0_i32_0 : i32, i32
  }
  func.func @transform_5(%arg0: i32) -> (i32, i32) {
    %c0_i32 = arith.constant 0 : i32
    %c0_i32_0 = arith.constant 0 : i32
    %c0_i32_1 = arith.constant 0 : i32
    return %c0_i32, %c0_i32_0 : i32, i32
  }
  func.func @transform_6(%arg0: i32) -> (i32, i32) {
    %c0_i32 = arith.constant 0 : i32
    %c0_i32_0 = arith.constant 0 : i32
    return %arg0, %c0_i32 : i32, i32
  }
}

</mosaic_0001>

<llo_original>
// kernel: tpu_custom_call.1
$region0: #{tpu_custom_call.1}
  #allocation0 [shape = 'u32[]', space=smem, size = 0x4, offset = 0x4, fixed_abs, tag = 'smem constant byte address 0x4 - core index']
  #allocation1 [shape = 'u32[144,128]{1,0:T(1,128)}', space=vmem, size = 0x12000, scoped, tag = 'internal scratch']
  %s0 = inlined_call_operand.hbm [shape: bf16[16,128], index: 0, kind: input, shape index: {}]
  %s1 = inlined_call_operand.hbm [shape: f32[16,128], index: 1, kind: input, shape index: {}]
  %s2 = inlined_call_operand.hbm [shape: bf16[128,128], index: 2, kind: input, shape index: {}]
  %s3 = inlined_call_operand.vmem [shape: f32[1,128], index: 3, kind: input, shape index: {}]
  %s4 = inlined_call_operand.vmem [shape: f32[1,128], index: 4, kind: input, shape index: {}]
  %s5 = inlined_call_operand.vmem [shape: f32[1,128], index: 5, kind: input, shape index: {}]
  %s6 = inlined_call_operand.hbm [shape: f32[16,128], index: 6, kind: output, shape index: {}]
  %s7 = sld [smem:[#allocation0]]
  $region46: #{tpu_custom_call.1} parent=0
    _
  %s9 = ssub.s32 1, %s7
  %s10 = scalar_select 0, %s9, %s7
  $region1: #{tpu_custom_call.1} parent=0
    #allocation2 [shape = 'u8[4096]{0}', space=vmem, size = 0x1000, scoped, tag = 'input window, operand 0, single buffered']
    #allocation3 [shape = 's32[1]{0}', space=sflag, size = 0x4, scoped, tag = 'scoped memory for tpu_custom_call.1']
    #allocation4 [shape = 's32[1]{0}', space=sflag, size = 0x4, scoped, tag = 'scoped memory for tpu_custom_call.1']
    #allocation5 [shape = 'u8[8192]{0}', space=vmem, size = 0x2000, scoped, tag = 'input window, operand 1, single buffered']
    #allocation6 [shape = 's32[1]{0}', space=sflag, size = 0x4, scoped, tag = 'scoped memory for tpu_custom_call.1']
    #allocation7 [shape = 'u8[32768]{0}', space=vmem, size = 0x8000, scoped, tag = 'input window, operand 2, single buffered']
    #allocation8 [shape = 'u8[8192]{0}', space=vmem, size = 0x2000, scoped, tag = 'output window, operand 0, single buffered']
    %11 = vsyncpa [#allocation3], 0
    %12 = vsyncpa [#allocation6], 0
    %13 = vsyncpa [#allocation4], 0
    // Predicated region
    $region2: #{tpu_custom_call.1} parent=1 // pred_check
      _
    $region3: #{tpu_custom_call.1} parent=1 // pred_check_branch
      %15 = sbr.rel (0) target = $region5
    $region4: #{tpu_custom_call.1} parent=1 // pred_region
      %s17 = ssub.s32 128, 128
      %18 = vsyncadd [#allocation3], %s17
      %s19 = sshll.u32 [#allocation2], 4
      %s20 = int_to_ptr.vmem [resolvable:$true] %s19
      %25 = dma.hbm_to_vmem [thread:$0]  %s0, 128, %s20, [#allocation3], 64, 64, 4
    $region5: #{tpu_custom_call.1} parent=1 // pred_fallthru
      _
    // Predicated region
    $region6: #{tpu_custom_call.1} parent=1 // pred_check
      _
    $region7: #{tpu_custom_call.1} parent=1 // pred_check_branch
      %27 = sbr.rel (0) target = $region9
    $region8: #{tpu_custom_call.1} parent=1 // pred_region
      %s29 = ssub.s32 256, 256
      %30 = vsyncadd [#allocation6], %s29
      %s31 = sshll.u32 [#allocation5], 4
      %s32 = int_to_ptr.vmem [resolvable:$true] %s31
      %37 = dma.hbm_to_vmem [thread:$0]  %s1, 256, %s32, [#allocation6], 128, 128, 8
    $region9: #{tpu_custom_call.1} parent=1 // pred_fallthru
      _
    // Predicated region
    $region10: #{tpu_custom_call.1} parent=1 // pred_check
      _
    $region11: #{tpu_custom_call.1} parent=1 // pred_check_branch
      %39 = sbr.rel (0) target = $region13
    $region12: #{tpu_custom_call.1} parent=1 // pred_region
      %s41 = ssub.s32 1024, 1024
      %42 = vsyncadd [#allocation6], %s41
      %s43 = sshll.u32 [#allocation7], 4
      %s44 = int_to_ptr.vmem [resolvable:$true] %s43
      %49 = dma.hbm_to_vmem [thread:$0]  %s2, 1024, %s44, [#allocation6], 64, 64, 4
    $region13: #{tpu_custom_call.1} parent=1 // pred_fallthru
      _
    // Predicated region
    $region14: #{tpu_custom_call.1} parent=1 // pred_check
      _
    $region15: #{tpu_custom_call.1} parent=1 // pred_check_branch
      %51 = sbr.rel (0) target = $region17
    $region16: #{tpu_custom_call.1} parent=1 // pred_region
      _
    $region17: #{tpu_custom_call.1} parent=1 // pred_fallthru
      _
    // Predicated region
    $region18: #{tpu_custom_call.1} parent=1 // pred_check
      _
    $region19: #{tpu_custom_call.1} parent=1 // pred_check_branch
      %53 = sbr.rel (0) target = $region21
    $region20: #{tpu_custom_call.1} parent=1 // pred_region
      _
    $region21: #{tpu_custom_call.1} parent=1 // pred_fallthru
      _
    // Predicated region
    $region22: #{tpu_custom_call.1} parent=1 // pred_check
      _
    $region23: #{tpu_custom_call.1} parent=1 // pred_check_branch
      %55 = sbr.rel (0) target = $region25
    $region24: #{tpu_custom_call.1} parent=1 // pred_region
      _
    $region25: #{tpu_custom_call.1} parent=1 // pred_fallthru
      _
    // Predicated region
    $region26: #{tpu_custom_call.1} parent=1 // pred_check
      _
    $region27: #{tpu_custom_call.1} parent=1 // pred_check_branch
      %57 = sbr.rel (0) target = $region29
    $region28: #{tpu_custom_call.1} parent=1 // pred_region
      %58 = dma.done [#allocation3], 128
    $region29: #{tpu_custom_call.1} parent=1 // pred_fallthru
      _
    // Predicated region
    $region30: #{tpu_custom_call.1} parent=1 // pred_check
      _
    $region31: #{tpu_custom_call.1} parent=1 // pred_check_branch
      %60 = sbr.rel (0) target = $region33
    $region32: #{tpu_custom_call.1} parent=1 // pred_region
      %61 = dma.done [#allocation6], 256
    $region33: #{tpu_custom_call.1} parent=1 // pred_fallthru
      _
    // Predicated region
    $region34: #{tpu_custom_call.1} parent=1 // pred_check
      _
    $region35: #{tpu_custom_call.1} parent=1 // pred_check_branch
      %63 = sbr.rel (0) target = $region37
    $region36: #{tpu_custom_call.1} parent=1 // pred_region
      %64 = dma.done [#allocation6], 1024
    $region37: #{tpu_custom_call.1} parent=1 // pred_fallthru
      _
    %v66 = vld [vmem:[#allocation2] sm:$0xf]
    %v67 = vld [vmem:[#allocation2 + $0x4] sm:$0xf]
    %v68 = vld [vmem:[#allocation7] sm:$0xf]
    %v69 = vld [vmem:[#allocation7 + $0x4] sm:$0xf]
    %v70 = vld [vmem:[#allocation7 + $0x8] sm:$0xf]
    %v71 = vld [vmem:[#allocation7 + $0xc] sm:$0xf]
    %v72 = vld [vmem:[#allocation7 + $0x10] sm:$0xf]
    %v73 = vld [vmem:[#allocation7 + $0x14] sm:$0xf]
    %v74 = vld [vmem:[#allocation7 + $0x18] sm:$0xf]
    %v75 = vld [vmem:[#allocation7 + $0x1c] sm:$0xf]
    %v76 = vld [vmem:[#allocation7 + $0x20] sm:$0xf]
    %v77 = vld [vmem:[#allocation7 + $0x24] sm:$0xf]
    %v78 = vld [vmem:[#allocation7 + $0x28] sm:$0xf]
    %v79 = vld [vmem:[#allocation7 + $0x2c] sm:$0xf]
    %v80 = vld [vmem:[#allocation7 + $0x30] sm:$0xf]
    %v81 = vld [vmem:[#allocation7 + $0x34] sm:$0xf]
    %v82 = vld [vmem:[#allocation7 + $0x38] sm:$0xf]
    %v83 = vld [vmem:[#allocation7 + $0x3c] sm:$0xf]
    %v84 = vld [vmem:[%s3] sm:$0x1]
    %v86 = vlaneseq
    %v87 = vshrl.u32 %v86, 7
    %v88 = vsub.s32 0, %v87
    %v89 = vrot.slane %v84, %v88
    %v93 = vunpack.c.l.b16 %v66
    %v94 = vunpack.c.l.b16 %v67
    %v95 = vpack.c.b16 %v94, %v93
    %v113 = vunpack.c.l.b16 %v68
    %v114 = vunpack.c.l.b16 %v69
    %v115 = vunpack.c.l.b16 %v70
    %v116 = vunpack.c.l.b16 %v71
    %v117 = vunpack.c.l.b16 %v72
    %v118 = vunpack.c.l.b16 %v73
    %v119 = vunpack.c.l.b16 %v74
    %v120 = vunpack.c.l.b16 %v75
    %v121 = vunpack.c.l.b16 %v76
    %v122 = vunpack.c.l.b16 %v77
    %v123 = vunpack.c.l.b16 %v78
    %v124 = vunpack.c.l.b16 %v79
    %v125 = vunpack.c.l.b16 %v80
    %v126 = vunpack.c.l.b16 %v81
    %v127 = vunpack.c.l.b16 %v82
    %v128 = vunpack.c.l.b16 %v83
    %v129 = vpack.c.b16 %v114, %v113
    %v130 = vpack.c.b16 %v116, %v115
    %v131 = vpack.c.b16 %v118, %v117
    %v132 = vpack.c.b16 %v120, %v119
    %v133 = vpack.c.b16 %v122, %v121
    %v134 = vpack.c.b16 %v124, %v123
    %v135 = vpack.c.b16 %v126, %v125
    %v136 = vpack.c.b16 %v128, %v127
    %145 = vmatprep.subr.bf16.mxu0 0
    %146 = vmatpush1.bf16.msra.mxu0 %v136
    %147 = vmatprep.subr.bf16.mxu0 0
    %148 = vmatpush1.bf16.msra.mxu0 %v135
    %149 = vmatprep.subr.bf16.mxu0 0
    %150 = vmatpush1.bf16.msra.mxu0 %v134
    %151 = vmatprep.subr.bf16.mxu0 0
    %152 = vmatpush1.bf16.msra.mxu0 %v133
    %153 = vmatprep.subr.bf16.mxu0 0
    %154 = vmatpush1.bf16.msra.mxu0 %v132
    %155 = vmatprep.subr.bf16.mxu0 0
    %156 = vmatpush1.bf16.msra.mxu0 %v131
    %157 = vmatprep.subr.bf16.mxu0 0
    %158 = vmatpush1.bf16.msra.mxu0 %v130
    %159 = vmatprep.subr.bf16.mxu0 0
    %160 = vmatpush1.bf16.msra.mxu0 %v129
    %161 = vmatprep.subr.bf16.mxu0 0
    %162 = vmatpush2.bf16.msra.mxu0 0
    %163 = vmatprep.subr.bf16.mxu0 0
    %164 = vmatpush2.bf16.msra.mxu0 0
    %165 = vmatprep.subr.bf16.mxu0 0
    %166 = vmatpush2.bf16.msra.mxu0 0
    %167 = vmatprep.subr.bf16.mxu0 0
    %168 = vmatpush2.bf16.msra.mxu0 0
    %169 = vmatprep.subr.bf16.mxu0 0
    %170 = vmatpush2.bf16.msra.mxu0 0
    %171 = vmatprep.subr.bf16.mxu0 0
    %172 = vmatpush2.bf16.msra.mxu0 0
    %173 = vmatprep.subr.bf16.mxu0 0
    %174 = vmatpush2.bf16.msra.mxu0 0
    %175 = vmatprep.subr.bf16.mxu0 0
    %176 = vmatpush2.bf16.msra.mxu0 0
    %177 = vmatprep.mubr.bf16.mxu0 0
    %178 = vmatmul.mubr.bf16.gmra.mxu0 %v95
    %v179 = vpop.f32.mrf.mxu0
    %v180 = vadd.f32 %v89, %v179
    %v181 = vpop.f32.mrf.mxu0
    %v182 = vpop.f32.mrf.mxu0
    %v183 = vadd.f32 %v89, %v182
    %v184 = vpop.f32.mrf.mxu0
    %185 = vdwg.mxu0
    %v186 = vld [vmem:[#allocation5] sm:$0xff]
    %v187 = vld [vmem:[#allocation5 + $0x8] sm:$0xff]
    %v188 = vadd.f32 %v180, %v186
    %v189 = vadd.f32 %v183, %v187
    %190 = vadd.xlane.f32.xlu0 %v188
    %v191 = vpop.xlane.xlu0 %190
    %192 = vadd.xlane.f32.xlu0 %v189
    %v193 = vpop.xlane.xlu0 %192
    %v194 = vmul.f32 %v191, 0.0078125
    %v195 = vmul.f32 %v193, 0.0078125
    %v196 = vsub.f32 %v188, %v194
    %v197 = vsub.f32 %v189, %v195
    %v198 = vmul.f32 %v196, %v196
    %v199 = vmul.f32 %v197, %v197
    %200 = vadd.xlane.f32.xlu0 %v198
    %v201 = vpop.xlane.xlu0 %200
    %202 = vadd.xlane.f32.xlu0 %v199
    %v203 = vpop.xlane.xlu0 %202
    %v204 = vmul.f32 %v201, 0.0078125
    %v205 = vmul.f32 %v203, 0.0078125
    %v206 = vadd.f32 %v204, 1e-12
    %v207 = vadd.f32 %v205, 1e-12
    %v208 = vrsqrt.pop %v206
    %v209 = vrsqrt.pop %v207
    %v210 = vmul.f32 %v196, %v208
    %v211 = vmul.f32 %v197, %v209
    %v212 = vld [vmem:[%s4] sm:$0x1]
    %v214 = vlaneseq
    %v215 = vshrl.u32 %v214, 7
    %v216 = vsub.s32 0, %v215
    %v217 = vrot.slane %v212, %v216
    %v219 = vmul.f32 %v210, %v217
    %v220 = vmul.f32 %v211, %v217
    %v221 = vld [vmem:[%s5] sm:$0x1]
    %v223 = vlaneseq
    %v224 = vshrl.u32 %v223, 7
    %v225 = vsub.s32 0, %v224
    %v226 = vrot.slane %v221, %v225
    %v228 = vadd.f32 %v219, %v226
    %v229 = vadd.f32 %v220, %v226
    %230 = vst [vmem:[#allocation8] sm:$0xff] %v228
    %231 = vst [vmem:[#allocation8 + $0x8] sm:$0xff] %v229
    // Predicated region
    $region38: #{tpu_custom_call.1} parent=1 // pred_check
      _
    $region39: #{tpu_custom_call.1} parent=1 // pred_check_branch
      %233 = sbr.rel (0) target = $region41
    $region40: #{tpu_custom_call.1} parent=1 // pred_region
      %s235 = ssub.s32 256, 256
      %236 = vsyncadd [#allocation4], %s235
      %s237 = sshll.u32 [#allocation8], 4
      %s238 = int_to_ptr.vmem [resolvable:$true] %s237
      %243 = dma.vmem_to_hbm [thread:$0]  %s238, 256, %s6, [#allocation4], 128, 128, 8
    $region41: #{tpu_custom_call.1} parent=1 // pred_fallthru
      _
    // Predicated region
    $region42: #{tpu_custom_call.1} parent=1 // pred_check
      _
    $region43: #{tpu_custom_call.1} parent=1 // pred_check_branch
      %245 = sbr.rel (0) target = $region45
    $region44: #{tpu_custom_call.1} parent=1 // pred_region
      %246 = dma.done [#allocation4], 256
    $region45: #{tpu_custom_call.1} parent=1 // pred_fallthru
      _
    %247 = vsyncpa [#allocation3], 1
    %248 = vsyncpa [#allocation6], 1
    %249 = vsyncpa [#allocation4], 1

</llo_original>
